<compile_context>
chip_gen: v7x
topology: tpu7x:2x2x1
jax: 0.10.0
libtpu: 0.0.40
codegen_flags: <defaults>
</compile_context>

<pallas_src>
import math
import functools

import jax
import jax.numpy as jnp
from jax.experimental import pallas as pl
from jax.experimental.pallas import tpu as pltpu


def _round_up(x, m):
    return (x + m - 1) // m * m


def _gelu_tanh(x):
    # tanh-approx GELU matching the torch.jit.script'd gelu(); x*x*x keeps the
    # cube on the VPU instead of lowering pow(x, 3.0) to exp/log on the EUP.
    c = math.sqrt(2.0 / math.pi)
    return 0.5 * x * (1.0 + jnp.tanh(c * (x + 0.044715 * (x * x * x))))


@functools.lru_cache(maxsize=None)
def _vmem_budget_bytes():
    """~85% of physical VMEM; leaves headroom for Mosaic internal scratch."""
    phys = 64 * 1024 * 1024  # conservative default (v7x per-TC VMEM)
    try:
        info = pltpu.get_tpu_info()
        for attr in ("vmem_capacity_bytes", "vmem_bytes", "vmem_size_bytes"):
            v = getattr(info, attr, None)
            if v:
                phys = int(v)
                break
    except Exception:
        pass
    return int(phys * 0.85)


def _pick_th(H, target, fits):
    """Largest multiple-of-128 divisor of H that is <= target and fits the VMEM
    budget; falls back to the smallest 128-multiple divisor."""
    if H % 128 != 0:
        # TODO(synk): pad H for hidden dims that are not multiples of 128.
        return H
    divs = [d for d in range(128, H + 1, 128) if H % d == 0]
    cand = [d for d in divs if d <= target] or [divs[0]]
    for d in reversed(cand):
        if fits(d):
            return d
    return cand[0]


# ----------------------------------------------------------------------------
# Kernels
# ----------------------------------------------------------------------------
def mlp_kernel_resident(x_ref, w1_ref, b1_ref, w2_ref, b2_ref, o_ref):
    # Weights fully VMEM-resident (constant index maps) -> single fused step
    # per row tile, no reduction axis / accumulator needed.
    h = jnp.dot(x_ref[...], w1_ref[...], preferred_element_type=jnp.float32)
    h = h + b1_ref[...].astype(jnp.float32)
    g = _gelu_tanh(h)                                   # f32 (safe on v5e)
    out = jnp.dot(g.astype(w2_ref.dtype), w2_ref[...],
                  preferred_element_type=jnp.float32)
    o_ref[...] = (out + b2_ref[...].astype(jnp.float32)).astype(o_ref.dtype)


def mlp_kernel_tiled(x_ref, w1_ref, b1_ref, w2_ref, b2_ref, o_ref, acc_ref):
    # Grid: (row tiles, hidden tiles).  Hidden axis is the reduction.
    # x_ref:  (tm, C)   activation row tile (already in the MXU compute dtype)
    # w1_ref: (C, th)   c_fc weight slice ([in, out])
    # b1_ref: (1, th)   c_fc bias slice
    # w2_ref: (th, C)   c_proj weight slice ([in, out])
    # b2_ref: (1, C)    c_proj bias
    # acc_ref:(tm, C)   f32 accumulator scratch (persists across h steps)
    h_idx = pl.program_id(1)

    @pl.when(h_idx == 0)
    def _init():
        acc_ref[...] = jnp.zeros_like(acc_ref)

    h = jnp.dot(x_ref[...], w1_ref[...], preferred_element_type=jnp.float32)
    h = h + b1_ref[...].astype(jnp.float32)
    g = _gelu_tanh(h)                                   # f32 (safe on v5e)
    acc_ref[...] += jnp.dot(g.astype(w2_ref.dtype), w2_ref[...],
                            preferred_element_type=jnp.float32)

    @pl.when(h_idx == pl.num_programs(1) - 1)
    def _finalize():
        o_ref[...] = (acc_ref[...] + b2_ref[...].astype(jnp.float32)
                      ).astype(o_ref.dtype)


# ----------------------------------------------------------------------------
# Parameter prep + wrapper
# ----------------------------------------------------------------------------
def prepare_mlp_params(w_fc, b_fc, w_proj, b_proj, dtype=jnp.bfloat16):
    """One-time conversion from PyTorch nn.Linear layout ([out, in]) to the
    kernel's [in, out] layout.  Call once at parameter setup, NOT per forward.
    Defaults to bf16 for full MXU throughput (f32 accumulation is kept in the
    kernel); pass dtype=jnp.float32 for exact-f32 matmuls."""
    w1 = jnp.asarray(w_fc, dtype=dtype).T          # (C, H)
    w2 = jnp.asarray(w_proj, dtype=dtype).T        # (H, C)
    b1 = jnp.asarray(b_fc, dtype=dtype).reshape(1, -1)
    b2 = jnp.asarray(b_proj, dtype=dtype).reshape(1, -1)
    return w1, b1, w2, b2


@functools.partial(jax.jit, static_argnames=("tm", "th", "resident"))
def mlp_forward(x, w1, b1, w2, b2, *, tm=512, th=512, resident=None):
    """x: [B, T, C].  w1: [C, 4C], b1: [1, 4C], w2: [4C, C], b2: [1, C]
    (from prepare_mlp_params).  `resident=None` auto-selects the
    resident-weight fast path when the weights fit VMEM."""
    B, T, C = x.shape
    H = w1.shape[1]
    M = B * T

    wdtype = w1.dtype
    wbytes = jnp.dtype(wdtype).itemsize
    obytes = jnp.dtype(x.dtype).itemsize

    # --- row tile ----------------------------------------------------------
    tm = _round_up(max(8, tm), 8)
    tm = min(tm, _round_up(M, 8))
    M_pad = _round_up(M, tm)
    n_m = M_pad // tm

    budget = _vmem_budget_bytes()

    # --- resident-weight fast path feasibility ------------------------------
    # (weights counted twice: Pallas may allocate 2 pipeline buffers even for
    # constant-index blocks — conservative.)
    res_bytes = (
        2 * (C * H + H * C + H + C) * wbytes   # w1, w2, b1, b2
        + 2 * tm * C * wbytes                  # x tile (double buffered)
        + 2 * tm * C * obytes                  # output tile
        + 2 * tm * H * 4                       # h / g f32 intermediates
        + tm * C * 4                           # proj result before store
    )
    if resident is None:
        resident = res_bytes <= budget

    # --- flatten, cast to the MXU compute dtype ONCE, pad rows --------------
    x2d = x.reshape(M, C).astype(wdtype)
    if M_pad != M:
        x2d = jnp.pad(x2d, ((0, M_pad - M), (0, 0)))
    out_shape = jax.ShapeDtypeStruct((M_pad, C), x.dtype)

    # NOTE: for production n_embd (multiples of 128) the output lane dim is
    # unmasked; C < 128 (tiny test configs) just means masked partial stores.

    if resident:
        vmem_limit = min(max(int(res_bytes * 1.25), 32 * 1024 * 1024), budget)
        out2d = pl.pallas_call(
            mlp_kernel_resident,
            out_shape=out_shape,
            grid_spec=pltpu.PrefetchScalarGridSpec(
                num_scalar_prefetch=0,
                grid=(n_m,),
                in_specs=[
                    pl.BlockSpec((tm, C), lambda i: (i, 0)),   # x row tile
                    pl.BlockSpec((C, H), lambda i: (0, 0)),    # w1 (resident)
                    pl.BlockSpec((1, H), lambda i: (0, 0)),    # b1 (resident)
                    pl.BlockSpec((H, C), lambda i: (0, 0)),    # w2 (resident)
                    pl.BlockSpec((1, C), lambda i: (0, 0)),    # b2 (resident)
                ],
                out_specs=pl.BlockSpec((tm, C), lambda i: (i, 0)),
            ),
            compiler_params=pltpu.CompilerParams(
                dimension_semantics=("parallel",),
                vmem_limit_bytes=vmem_limit,
            ),
        )(x2d, w1, b1, w2, b2)
    else:
        def tiled_bytes(th_):
            return (
                2 * tm * C * wbytes                 # x tile
                + 2 * (C * th_ + th_ * C) * wbytes  # w1 / w2 slices
                + 2 * (th_ + C) * wbytes            # biases
                + 2 * tm * C * obytes               # output tile
                + tm * C * 4                        # f32 accumulator scratch
                + 2 * tm * th_ * 4                  # h / g intermediates
            )

        th_eff = _pick_th(H, min(th, H), lambda d: tiled_bytes(d) <= budget)
        n_h = H // th_eff
        vmem_limit = min(max(int(tiled_bytes(th_eff) * 1.25),
                             32 * 1024 * 1024), budget)

        out2d = pl.pallas_call(
            mlp_kernel_tiled,
            out_shape=out_shape,
            grid_spec=pltpu.PrefetchScalarGridSpec(
                num_scalar_prefetch=0,
                grid=(n_m, n_h),
                in_specs=[
                    pl.BlockSpec((tm, C), lambda i, h: (i, 0)),       # x tile
                    pl.BlockSpec((C, th_eff), lambda i, h: (0, h)),   # w1 slice
                    pl.BlockSpec((1, th_eff), lambda i, h: (0, h)),   # b1 slice
                    pl.BlockSpec((th_eff, C), lambda i, h: (h, 0)),   # w2 slice
                    pl.BlockSpec((1, C), lambda i, h: (0, 0)),        # b2
                ],
                out_specs=pl.BlockSpec((tm, C), lambda i, h: (i, 0)),
                scratch_shapes=[pltpu.VMEM((tm, C), jnp.float32)],
            ),
            compiler_params=pltpu.CompilerParams(
                dimension_semantics=("parallel", "arbitrary"),
                vmem_limit_bytes=vmem_limit,
            ),
        )(x2d, w1, b1, w2, b2)

    return out2d[:M].reshape(B, T, C)


# ----------------------------------------------------------------------------
# Reference + tests
# ----------------------------------------------------------------------------
def reference_mlp(x, w_fc, b_fc, w_proj, b_proj):
    # pure-JAX reference in PyTorch layout: weight [out, in], bias [out]
    h = jnp.einsum("btc,hc->bth", x, w_fc) + b_fc
    g = _gelu_tanh(h)
    return jnp.einsum("bth,ch->btc", g, w_proj) + b_proj


def _make_params(key, C, H):
    k1, k2, k3, k4 = jax.random.split(key, 4)
    w_fc = jax.random.normal(k1, (H, C), dtype=jnp.float32) * (1.0 / math.sqrt(C))
    b_fc = jax.random.normal(k2, (H,), dtype=jnp.float32) * 0.02
    w_proj = jax.random.normal(k3, (C, H), dtype=jnp.float32) * (1.0 / math.sqrt(H))
    b_proj = jax.random.normal(k4, (C,), dtype=jnp.float32) * 0.02
    return w_fc, b_fc, w_proj, b_proj


if __name__ == "__main__":
    key = jax.random.PRNGKey(0)

    # --- test 1: module-sized config (n_embd=32), f32 weights, resident path -
    B, T, C = 2, 8, 32
    H = 4 * C
    kx, kp = jax.random.split(key)
    x = jax.random.normal(kx, (B, T, C), dtype=jnp.float32)
    w_fc, b_fc, w_proj, b_proj = _make_params(kp, C, H)

    w1, b1, w2, b2 = prepare_mlp_params(w_fc, b_fc, w_proj, b_proj,
                                        dtype=jnp.float32)      # exact path
    out = mlp_forward(x, w1, b1, w2, b2)
    out = jax.block_until_ready(out)
    ref = reference_mlp(x, w_fc, b_fc, w_proj, b_proj)
    assert out.shape == (B, T, C), out.shape
    assert jnp.allclose(out, ref, atol=1e-5, rtol=1e-5), float(
        jnp.max(jnp.abs(out - ref)))

    # --- test 2: bf16 MXU path (default), multi row tiles + row padding -----
    B2, T2, C2 = 2, 72, 128          # M = 144 (not a multiple of tm=64)
    H2 = 4 * C2                      # 512
    kx2, kp2 = jax.random.split(jax.random.PRNGKey(1))
    x2 = jax.random.normal(kx2, (B2, T2, C2), dtype=jnp.float32)
    w_fc2, b_fc2, w_proj2, b_proj2 = _make_params(kp2, C2, H2)

    w1b, b1b, w2b, b2b = prepare_mlp_params(w_fc2, b_fc2, w_proj2, b_proj2)  # bf16
    out2 = jax.block_until_ready(mlp_forward(x2, w1b, b1b, w2b, b2b, tm=64))
    ref2 = reference_mlp(x2, w_fc2, b_fc2, w_proj2, b_proj2)
    assert out2.shape == (B2, T2, C2), out2.shape
    assert jnp.allclose(out2, ref2, atol=6e-2, rtol=6e-2), float(
        jnp.max(jnp.abs(out2 - ref2)))

    # --- test 3: force the tiled (H-reduction) path, f32, n_h=4, padding ----
    w1c, b1c, w2c, b2c = prepare_mlp_params(w_fc2, b_fc2, w_proj2, b_proj2,
                                            dtype=jnp.float32)
    out3 = jax.block_until_ready(
        mlp_forward(x2, w1c, b1c, w2c, b2c, tm=64, th=128, resident=False))
    assert out3.shape == (B2, T2, C2), out3.shape
    assert jnp.allclose(out3, ref2, atol=1e-4, rtol=1e-4), float(
        jnp.max(jnp.abs(out3 - ref2)))

    print("KERNEL_OK")
</pallas_src>

<mosaic_0001>
module attributes {stable_mosaic.version = 11 : i64} {
  func.func @mlp_kernel_resident(%arg0: i32, %arg1: memref<16x32xf32, #tpu.memory_space<vmem>>, %arg2: memref<32x128xf32, #tpu.memory_space<vmem>>, %arg3: memref<1x128xf32, #tpu.memory_space<vmem>>, %arg4: memref<128x32xf32, #tpu.memory_space<vmem>>, %arg5: memref<1x32xf32, #tpu.memory_space<vmem>>, %arg6: memref<16x32xf32, #tpu.memory_space<vmem>>) attributes {dimension_semantics = [#tpu.dimension_semantics<parallel>], iteration_bounds = array<i64: 1>, scalar_prefetch = 0 : i64, scratch_operands = 0 : i64, tpu.core_type = #tpu.core_type<tc>, window_params = [{transform_indices = @transform_0, window_bounds = array<i64: 16, 32>}, {pipeline_mode = #tpu.pipeline_mode<synchronous>, transform_indices = @transform_1, window_bounds = array<i64: 32, 128>}, {pipeline_mode = #tpu.pipeline_mode<synchronous>, transform_indices = @transform_2, window_bounds = array<i64: 1, 128>}, {pipeline_mode = #tpu.pipeline_mode<synchronous>, transform_indices = @transform_3, window_bounds = array<i64: 128, 32>}, {pipeline_mode = #tpu.pipeline_mode<synchronous>, transform_indices = @transform_4, window_bounds = array<i64: 1, 32>}, {transform_indices = @transform_5, window_bounds = array<i64: 16, 32>}]} {
    %c0 = arith.constant 0 : index
    %c0_0 = arith.constant 0 : index
    %0 = vector.load %arg1[%c0, %c0_0] : memref<16x32xf32, #tpu.memory_space<vmem>>, vector<16x32xf32>
    %c0_1 = arith.constant 0 : index
    %c0_2 = arith.constant 0 : index
    %1 = vector.load %arg2[%c0_1, %c0_2] : memref<32x128xf32, #tpu.memory_space<vmem>>, vector<32x128xf32>
    %cst = arith.constant dense<0.000000e+00> : vector<16x128xf32>
    %2 = tpu.matmul %0, %1, %cst {dimension_numbers = #tpu.dot_dimension_numbers<[1], [0], [0], [1], [0, 0, 1, 1], [], []>} : vector<16x32xf32>, vector<32x128xf32>, vector<16x128xf32> -> vector<16x128xf32>
    %c0_3 = arith.constant 0 : index
    %c0_4 = arith.constant 0 : index
    %3 = vector.load %arg3[%c0_3, %c0_4] : memref<1x128xf32, #tpu.memory_space<vmem>>, vector<1x128xf32>
    %4 = vector.broadcast %3 : vector<1x128xf32> to vector<16x128xf32>
    %5 = arith.addf %2, %4 : vector<16x128xf32>
    %cst_5 = arith.constant 5.000000e-01 : f32
    %6 = vector.broadcast %cst_5 : f32 to vector<16x128xf32>
    %7 = arith.mulf %6, %5 : vector<16x128xf32>
    %8 = arith.mulf %5, %5 : vector<16x128xf32>
    %9 = arith.mulf %8, %5 : vector<16x128xf32>
    %cst_6 = arith.constant 4.471500e-02 : f32
    %10 = vector.broadcast %cst_6 : f32 to vector<16x128xf32>
    %11 = arith.mulf %10, %9 : vector<16x128xf32>
    %12 = arith.addf %5, %11 : vector<16x128xf32>
    %cst_7 = arith.constant 0.797884583 : f32
    %13 = vector.broadcast %cst_7 : f32 to vector<16x128xf32>
    %14 = arith.mulf %13, %12 : vector<16x128xf32>
    %15 = math.tanh %14 : vector<16x128xf32>
    %cst_8 = arith.constant 1.000000e+00 : f32
    %16 = vector.broadcast %cst_8 : f32 to vector<16x128xf32>
    %17 = arith.addf %16, %15 : vector<16x128xf32>
    %18 = arith.mulf %7, %17 : vector<16x128xf32>
    %c0_9 = arith.constant 0 : index
    %c0_10 = arith.constant 0 : index
    %19 = vector.load %arg4[%c0_9, %c0_10] : memref<128x32xf32, #tpu.memory_space<vmem>>, vector<128x32xf32>
    %cst_11 = arith.constant dense<0.000000e+00> : vector<16x32xf32>
    %20 = tpu.matmul %18, %19, %cst_11 {dimension_numbers = #tpu.dot_dimension_numbers<[1], [0], [0], [1], [0, 0, 1, 1], [], []>} : vector<16x128xf32>, vector<128x32xf32>, vector<16x32xf32> -> vector<16x32xf32>
    %c0_12 = arith.constant 0 : index
    %c0_13 = arith.constant 0 : index
    %21 = vector.load %arg5[%c0_12, %c0_13] : memref<1x32xf32, #tpu.memory_space<vmem>>, vector<1x32xf32>
    %22 = vector.broadcast %21 : vector<1x32xf32> to vector<16x32xf32>
    %23 = arith.addf %20, %22 : vector<16x32xf32>
    %c0_14 = arith.constant 0 : index
    %c0_15 = arith.constant 0 : index
    %24 = vector.load %arg6[%c0_14, %c0_15] : memref<16x32xf32, #tpu.memory_space<vmem>>, vector<16x32xf32>
    tpu.vector_store %arg6[%c0_14, %c0_15], %23 {strides = array<i32>} : memref<16x32xf32, #tpu.memory_space<vmem>>, vector<16x32xf32>,
    return
  }
  func.func @transform_0(%arg0: i32) -> (i32, i32) {
    %c0_i32 = arith.constant 0 : i32
    %c0_i32_0 = arith.constant 0 : i32
    return %arg0, %c0_i32 : i32, i32
  }
  func.func @transform_1(%arg0: i32) -> (i32, i32) {
    %c0_i32 = arith.constant 0 : i32
    %c0_i32_0 = arith.constant 0 : i32
    %c0_i32_1 = arith.constant 0 : i32
    return %c0_i32, %c0_i32_0 : i32, i32
  }
  func.func @transform_2(%arg0: i32) -> (i32, i32) {
    %c0_i32 = arith.constant 0 : i32
    %c0_i32_0 = arith.constant 0 : i32
    %c0_i32_1 = arith.constant 0 : i32
    return %c0_i32, %c0_i32_0 : i32, i32
  }
  func.func @transform_3(%arg0: i32) -> (i32, i32) {
    %c0_i32 = arith.constant 0 : i32
    %c0_i32_0 = arith.constant 0 : i32
    %c0_i32_1 = arith.constant 0 : i32
    return %c0_i32, %c0_i32_0 : i32, i32
  }
  func.func @transform_4(%arg0: i32) -> (i32, i32) {
    %c0_i32 = arith.constant 0 : i32
    %c0_i32_0 = arith.constant 0 : i32
    %c0_i32_1 = arith.constant 0 : i32
    return %c0_i32, %c0_i32_0 : i32, i32
  }
  func.func @transform_5(%arg0: i32) -> (i32, i32) {
    %c0_i32 = arith.constant 0 : i32
    %c0_i32_0 = arith.constant 0 : i32
    return %arg0, %c0_i32 : i32, i32
  }
}

</mosaic_0001>

<llo_original>
// kernel: mlp_forward.1
$region0: #{mlp_forward.1}
  #allocation0 [shape = 'u32[]', space=smem, size = 0x4, offset = 0x4, fixed_abs, tag = 'smem constant byte address 0x4 - core index']
  #allocation1 [shape = 'u32[144,128]{1,0:T(1,128)}', space=vmem, size = 0x12000, scoped, tag = 'internal scratch']
  %s0 = inlined_call_operand.vmem [shape: f32[16,32], index: 0, kind: input, shape index: {}]
  %s1 = inlined_call_operand.vmem [shape: f32[32,128], index: 1, kind: input, shape index: {}]
  %s2 = inlined_call_operand.vmem [shape: f32[1,128], index: 2, kind: input, shape index: {}]
  %s3 = inlined_call_operand.vmem [shape: f32[128,32], index: 3, kind: input, shape index: {}]
  %s4 = inlined_call_operand.vmem [shape: f32[1,32], index: 4, kind: input, shape index: {}]
  %s5 = inlined_call_operand.hbm [shape: f32[16,32], index: 5, kind: output, shape index: {}]
  %s6 = sld [smem:[#allocation0]]
  $region30: #{mlp_forward.1} parent=0
    _
  %s8 = ssub.s32 1, %s6
  %s9 = scalar_select 0, %s8, %s6
  $region1: #{mlp_forward.1} parent=0
    #allocation2 [shape = 'u8[8192]{0}', space=vmem, size = 0x2000, scoped, tag = 'output window, operand 0, single buffered']
    #allocation3 [shape = 's32[1]{0}', space=sflag, size = 0x4, scoped, tag = 'scoped memory for mlp_forward.1']
    %10 = vsyncpa [#allocation3], 0
    // Predicated region
    $region2: #{mlp_forward.1} parent=1 // pred_check
      _
    $region3: #{mlp_forward.1} parent=1 // pred_check_branch
      %12 = sbr.rel (0) target = $region5
    $region4: #{mlp_forward.1} parent=1 // pred_region
      _
    $region5: #{mlp_forward.1} parent=1 // pred_fallthru
      _
    // Predicated region
    $region6: #{mlp_forward.1} parent=1 // pred_check
      _
    $region7: #{mlp_forward.1} parent=1 // pred_check_branch
      %14 = sbr.rel (0) target = $region9
    $region8: #{mlp_forward.1} parent=1 // pred_region
      _
    $region9: #{mlp_forward.1} parent=1 // pred_fallthru
      _
    // Predicated region
    $region10: #{mlp_forward.1} parent=1 // pred_check
      _
    $region11: #{mlp_forward.1} parent=1 // pred_check_branch
      %16 = sbr.rel (0) target = $region13
    $region12: #{mlp_forward.1} parent=1 // pred_region
      _
    $region13: #{mlp_forward.1} parent=1 // pred_fallthru
      _
    // Predicated region
    $region14: #{mlp_forward.1} parent=1 // pred_check
      _
    $region15: #{mlp_forward.1} parent=1 // pred_check_branch
      %18 = sbr.rel (0) target = $region17
    $region16: #{mlp_forward.1} parent=1 // pred_region
      _
    $region17: #{mlp_forward.1} parent=1 // pred_fallthru
      _
    // Predicated region
    $region18: #{mlp_forward.1} parent=1 // pred_check
      _
    $region19: #{mlp_forward.1} parent=1 // pred_check_branch
      %20 = sbr.rel (0) target = $region21
    $region20: #{mlp_forward.1} parent=1 // pred_region
      _
    $region21: #{mlp_forward.1} parent=1 // pred_fallthru
      _
    %v21 = vld [vmem:[%s0] sm:$0xff]
    %v22 = vld [vmem:[%s0 + $0x8] sm:$0xff]
    %v23 = vld [vmem:[%s1] sm:$0xff]
    %v24 = vld [vmem:[%s1 + $0x8] sm:$0xff]
    %v25 = vld [vmem:[%s1 + $0x10] sm:$0xff]
    %v26 = vld [vmem:[%s1 + $0x18] sm:$0xff]
    %v27 = vld [vmem:[%s2] sm:$0x1]
    %v29 = vlaneseq
    %v30 = vshrl.u32 %v29, 7
    %v31 = vsub.s32 0, %v30
    %v32 = vrot.slane %v27, %v31
    %vm34 = vcmask 261120
    %v36 = vsel %vm34, %v21, 0
    %v39 = vsel %vm34, %v22, 0
    %41 = vmatprep.subr.mxu0 0.0
    %42 = vmatpush1.msra.mxu0 %v23
    %43 = vmatprep.subr.mxu0 0.0
    %44 = vmatpush1.msra.mxu0 %v24
    %45 = vmatprep.subr.mxu0 0.0
    %46 = vmatpush1.msra.mxu0 %v25
    %47 = vmatprep.subr.mxu0 0.0
    %48 = vmatpush1.msra.mxu0 %v26
    %49 = vmatprep.subr.mxu0 0.0
    %50 = vmatpush1.msra.mxu0 0.0
    %51 = vmatprep.subr.mxu0 0.0
    %52 = vmatpush1.msra.mxu0 0.0
    %53 = vmatprep.subr.mxu0 0.0
    %54 = vmatpush1.msra.mxu0 0.0
    %55 = vmatprep.subr.mxu0 0.0
    %56 = vmatpush1.msra.mxu0 0.0
    %57 = vmatprep.subr.mxu0 0.0
    %58 = vmatpush1.msra.mxu0 0.0
    %59 = vmatprep.subr.mxu0 0.0
    %60 = vmatpush1.msra.mxu0 0.0
    %61 = vmatprep.subr.mxu0 0.0
    %62 = vmatpush1.msra.mxu0 0.0
    %63 = vmatprep.subr.mxu0 0.0
    %64 = vmatpush1.msra.mxu0 0.0
    %65 = vmatprep.subr.mxu0 0.0
    %66 = vmatpush1.msra.mxu0 0.0
    %67 = vmatprep.subr.mxu0 0.0
    %68 = vmatpush1.msra.mxu0 0.0
    %69 = vmatprep.subr.mxu0 0.0
    %70 = vmatpush1.msra.mxu0 0.0
    %71 = vmatprep.subr.mxu0 0.0
    %72 = vmatpush1.msra.mxu0 0.0
    %73 = vmatprep.subr.mxu0 0.0
    %74 = vmatpush1.msra.mxu0 0.0
    %75 = vmatprep.subr.mxu0 0.0
    %76 = vmatpush1.msra.mxu0 0.0
    %77 = vmatprep.subr.mxu0 0.0
    %78 = vmatpush1.msra.mxu0 0.0
    %79 = vmatprep.subr.mxu0 0.0
    %80 = vmatpush1.msra.mxu0 0.0
    %81 = vmatprep.subr.mxu0 0.0
    %82 = vmatpush1.msra.mxu0 0.0
    %83 = vmatprep.subr.mxu0 0.0
    %84 = vmatpush1.msra.mxu0 0.0
    %85 = vmatprep.subr.mxu0 0.0
    %86 = vmatpush1.msra.mxu0 0.0
    %87 = vmatprep.subr.mxu0 0.0
    %88 = vmatpush1.msra.mxu0 0.0
    %89 = vmatprep.subr.mxu0 0.0
    %90 = vmatpush1.msra.mxu0 0.0
    %91 = vmatprep.subr.mxu0 0.0
    %92 = vmatpush1.msra.mxu0 0.0
    %93 = vmatprep.subr.mxu0 0.0
    %94 = vmatpush1.msra.mxu0 0.0
    %95 = vmatprep.subr.mxu0 0.0
    %96 = vmatpush1.msra.mxu0 0.0
    %97 = vmatprep.subr.mxu0 0.0
    %98 = vmatpush1.msra.mxu0 0.0
    %99 = vmatprep.subr.mxu0 0.0
    %100 = vmatpush1.msra.mxu0 0.0
    %101 = vmatprep.subr.mxu0 0.0
    %102 = vmatpush1.msra.mxu0 0.0
    %103 = vmatprep.subr.mxu0 0.0
    %104 = vmatpush1.msra.mxu0 0.0
    %105 = vmatprep.mubr.f32.mxu0 0.0
    %106 = vmatmul.mubr.f32.gmra.mrb[0].mxu0 %v36
    %v107 = vpop.f32.mrb[0].mxu0
    %v108 = vadd.f32 %v32, %v107
    %v109 = vpop.f32.mrb[0].mxu0
    %110 = vmatprep.mubr.f32.mxu0 0.0
    %111 = vmatmul.mubr.f32.gmra.mrb[0].mxu0 %v39
    %v112 = vpop.f32.mrb[0].mxu0
    %v113 = vadd.f32 %v32, %v112
    %v114 = vpop.f32.mrb[0].mxu0
    %115 = vdwg.mxu0
    %v116 = vmul.f32 %v108, 0.5
    %v117 = vmul.f32 %v113, 0.5
    %v118 = vmul.f32 %v108, %v108
    %v119 = vmul.f32 %v113, %v113
    %v120 = vmul.f32 %v118, %v108
    %v121 = vmul.f32 %v119, %v113
    %v122 = vmul.f32 %v120, 0.044715
    %v123 = vmul.f32 %v121, 0.044715
    %v124 = vadd.f32 %v108, %v122
    %v125 = vadd.f32 %v113, %v123
    %v126 = vmul.f32 %v124, 0.7978846
    %v127 = vmul.f32 %v125, 0.7978846
    %v128 = vtanh.pop %v126
    %v129 = vtanh.pop %v127
    %v130 = vadd.f32 %v128, 1.0
    %v131 = vadd.f32 %v129, 1.0
    %v132 = vmul.f32 %v116, %v130
    %v133 = vmul.f32 %v117, %v131
    %v134 = vld [vmem:[%s3] sm:$0xff]
    %v135 = vld [vmem:[%s3 + $0x8] sm:$0xff]
    %v136 = vld [vmem:[%s3 + $0x10] sm:$0xff]
    %v137 = vld [vmem:[%s3 + $0x18] sm:$0xff]
    %v138 = vld [vmem:[%s3 + $0x20] sm:$0xff]
    %v139 = vld [vmem:[%s3 + $0x28] sm:$0xff]
    %v140 = vld [vmem:[%s3 + $0x30] sm:$0xff]
    %v141 = vld [vmem:[%s3 + $0x38] sm:$0xff]
    %v142 = vld [vmem:[%s3 + $0x40] sm:$0xff]
    %v143 = vld [vmem:[%s3 + $0x48] sm:$0xff]
    %v144 = vld [vmem:[%s3 + $0x50] sm:$0xff]
    %v145 = vld [vmem:[%s3 + $0x58] sm:$0xff]
    %v146 = vld [vmem:[%s3 + $0x60] sm:$0xff]
    %v147 = vld [vmem:[%s3 + $0x68] sm:$0xff]
    %v148 = vld [vmem:[%s3 + $0x70] sm:$0xff]
    %v149 = vld [vmem:[%s3 + $0x78] sm:$0xff]
    %v150 = vld [vmem:[%s4] sm:$0x1]
    %v152 = vlaneseq
    %v153 = vshrl.u32 %v152, 7
    %v154 = vsub.s32 0, %v153
    %v155 = vrot.slane %v150, %v154
    %157 = vmatprep.subr.mxu0 0.0
    %158 = vmatpush1.msra.mxu0 %v134
    %159 = vmatprep.subr.mxu0 0.0
    %160 = vmatpush1.msra.mxu0 %v135
    %161 = vmatprep.subr.mxu0 0.0
    %162 = vmatpush1.msra.mxu0 %v136
    %163 = vmatprep.subr.mxu0 0.0
    %164 = vmatpush1.msra.mxu0 %v137
    %165 = vmatprep.subr.mxu0 0.0
    %166 = vmatpush1.msra.mxu0 %v138
    %167 = vmatprep.subr.mxu0 0.0
    %168 = vmatpush1.msra.mxu0 %v139
    %169 = vmatprep.subr.mxu0 0.0
    %170 = vmatpush1.msra.mxu0 %v140
    %171 = vmatprep.subr.mxu0 0.0
    %172 = vmatpush1.msra.mxu0 %v141
    %173 = vmatprep.subr.mxu0 0.0
    %174 = vmatpush1.msra.mxu0 %v142
    %175 = vmatprep.subr.mxu0 0.0
    %176 = vmatpush1.msra.mxu0 %v143
    %177 = vmatprep.subr.mxu0 0.0
    %178 = vmatpush1.msra.mxu0 %v144
    %179 = vmatprep.subr.mxu0 0.0
    %180 = vmatpush1.msra.mxu0 %v145
    %181 = vmatprep.subr.mxu0 0.0
    %182 = vmatpush1.msra.mxu0 %v146
    %183 = vmatprep.subr.mxu0 0.0
    %184 = vmatpush1.msra.mxu0 %v147
    %185 = vmatprep.subr.mxu0 0.0
    %186 = vmatpush1.msra.mxu0 %v148
    %187 = vmatprep.subr.mxu0 0.0
    %188 = vmatpush1.msra.mxu0 %v149
    %189 = vmatprep.subr.mxu0 0.0
    %190 = vmatpush1.msra.mxu0 0.0
    %191 = vmatprep.subr.mxu0 0.0
    %192 = vmatpush1.msra.mxu0 0.0
    %193 = vmatprep.subr.mxu0 0.0
    %194 = vmatpush1.msra.mxu0 0.0
    %195 = vmatprep.subr.mxu0 0.0
    %196 = vmatpush1.msra.mxu0 0.0
    %197 = vmatprep.subr.mxu0 0.0
    %198 = vmatpush1.msra.mxu0 0.0
    %199 = vmatprep.subr.mxu0 0.0
    %200 = vmatpush1.msra.mxu0 0.0
    %201 = vmatprep.subr.mxu0 0.0
    %202 = vmatpush1.msra.mxu0 0.0
    %203 = vmatprep.subr.mxu0 0.0
    %204 = vmatpush1.msra.mxu0 0.0
    %205 = vmatprep.subr.mxu0 0.0
    %206 = vmatpush1.msra.mxu0 0.0
    %207 = vmatprep.subr.mxu0 0.0
    %208 = vmatpush1.msra.mxu0 0.0
    %209 = vmatprep.subr.mxu0 0.0
    %210 = vmatpush1.msra.mxu0 0.0
    %211 = vmatprep.subr.mxu0 0.0
    %212 = vmatpush1.msra.mxu0 0.0
    %213 = vmatprep.subr.mxu0 0.0
    %214 = vmatpush1.msra.mxu0 0.0
    %215 = vmatprep.subr.mxu0 0.0
    %216 = vmatpush1.msra.mxu0 0.0
    %217 = vmatprep.subr.mxu0 0.0
    %218 = vmatpush1.msra.mxu0 0.0
    %219 = vmatprep.subr.mxu0 0.0
    %220 = vmatpush1.msra.mxu0 0.0
    %221 = vmatprep.mubr.f32.mxu0 0.0
    %222 = vmatmul.mubr.f32.gmra.mrb[0].mxu0 %v132
    %v223 = vpop.f32.mrb[0].mxu0
    %v224 = vadd.f32 %v155, %v223
    %v225 = vpop.f32.mrb[0].mxu0
    %226 = vmatprep.mubr.f32.mxu0 0.0
    %227 = vmatmul.mubr.f32.gmra.mrb[0].mxu0 %v133
    %v228 = vpop.f32.mrb[0].mxu0
    %v229 = vadd.f32 %v155, %v228
    %v230 = vpop.f32.mrb[0].mxu0
    %231 = vdwg.mxu0
    %232 = vst.msk [vmem:[#allocation2] sm:$0xff] %vm34, %v224
    %233 = vst.msk [vmem:[#allocation2 + $0x8] sm:$0xff] %vm34, %v229
    // Predicated region
    $region22: #{mlp_forward.1} parent=1 // pred_check
      _
    $region23: #{mlp_forward.1} parent=1 // pred_check_branch
      %235 = sbr.rel (0) target = $region25
    $region24: #{mlp_forward.1} parent=1 // pred_region
      %s237 = ssub.s32 256, 256
      %238 = vsyncadd [#allocation3], %s237
      %s239 = sshll.u32 [#allocation2], 4
      %s240 = int_to_ptr.vmem [resolvable:$true] %s239
      %245 = dma.vmem_to_hbm [thread:$0]  %s240, 256, %s5, [#allocation3], 128, 128, 8
    $region25: #{mlp_forward.1} parent=1 // pred_fallthru
      _
    // Predicated region
    $region26: #{mlp_forward.1} parent=1 // pred_check
      _
    $region27: #{mlp_forward.1} parent=1 // pred_check_branch
      %247 = sbr.rel (0) target = $region29
    $region28: #{mlp_forward.1} parent=1 // pred_region
      %248 = dma.done [#allocation3], 256
    $region29: #{mlp_forward.1} parent=1 // pred_fallthru
      _
    %249 = vsyncpa [#allocation3], 1

</llo_original>
